<compile_context>
chip_gen: v7x
topology: tpu7x:2x2x1
jax: 0.10.0
libtpu: 0.0.40
codegen_flags: <defaults>
</compile_context>

<pallas_src>
import jax
import jax.numpy as jnp
from jax.experimental import pallas as pl
from jax.experimental.pallas import tpu as pltpu


def _make_sse_kernel(gated):
    def kernel(b_ref, w_ref, x_ref, o_ref, *gate_out):
        # b_ref: (1,)       scalar fused bias in SMEM (f32)
        # w_ref: (C, 1)     fused conv+BN weight in VMEM (f32), C on sublanes
        # x_ref: (N, C, tm) input tile, native dtype
        # o_ref: (N, tm)    sigmoid mask tile, native dtype
        # gate_out[0]: (N, C, tm) optional fused gate output (x * mask)
        x32 = x_ref[...].astype(jnp.float32)          # upcast in vregs, not HBM
        w = w_ref[...]                                # (C, 1)
        s = jnp.sum(x32 * w[None, :, :], axis=1)      # (N, tm) channel reduce
        mask = jax.nn.sigmoid(s + b_ref[0])
        o_ref[...] = mask.astype(o_ref.dtype)
        if gated:
            g_ref = gate_out[0]
            g_ref[...] = (x32 * mask[:, None, :]).astype(g_ref.dtype)
    return kernel


def _vmem_config():
    """Return (tile_budget_bytes, vmem_limit_bytes), generation aware."""
    cap = None
    try:
        info = pltpu.get_tpu_info()
        for name in ("vmem_capacity_bytes", "vmem_bytes", "vmem_size_bytes"):
            cap = getattr(info, name, None)
            if cap:
                break
    except Exception:
        cap = None
    if cap is not None and cap >= 128 * 1024 * 1024:
        # v5e / v6e: 128 MiB physical VMEM -> big blocks, fewer grid steps.
        return 48 * 1024 * 1024, 96 * 1024 * 1024
    # v7x (64 MiB per TC) or unknown: stay within the 32 MiB scoped default.
    return 14 * 1024 * 1024, 32 * 1024 * 1024


def _pick_tm(n, c, itemsize, l, gated, vmem_budget_bytes):
    """Largest lane tile keeping all buffers + f32 intermediates in budget."""
    sub = max(8, 32 // itemsize)            # sublane tile for native dtype
    cpad = -(-c // sub) * sub               # channels padded (native layout)
    cpad8 = -(-c // 8) * 8                  # channels padded (f32 temporaries)
    npad = -(-n // sub) * sub               # mask-output rows padded
    per_lane = 2 * n * cpad * itemsize      # x tile, double buffered
    per_lane += 2 * npad * itemsize         # mask output tile, double buffered
    per_lane += 2 * (-(-n // 8) * 8) * 4    # f32 acc / mask rows
    per_lane += 2 * n * cpad8 * 4           # f32 upcast + product intermediates
    if gated:
        per_lane += 2 * n * cpad * itemsize  # gated output tile, double buffered
        per_lane += n * cpad8 * 4            # gated f32 product intermediate
    tm = max(128, (vmem_budget_bytes // per_lane) // 128 * 128)
    if tm < l:
        return tm                            # multiple of 128; tail discarded
    if l <= 128:
        return l                             # single full-width block
    # Full width would fit in one block: still split into >=2 "parallel" grid
    # steps so both v7x TensorCores are used (costs ~0.35us elsewhere).
    return -(-((l + 1) // 2) // 128) * 128


def _fuse_conv_bn(conv_w, bn_gamma, bn_beta, bn_mean, bn_var, eps):
    # y = gamma * (w.x - mean) / sqrt(var + eps) + beta
    c = conv_w.shape[1]
    scale = bn_gamma / jnp.sqrt(bn_var + eps)                       # (1,)
    w_fused = (conv_w.reshape(c) * scale).astype(jnp.float32).reshape(c, 1)
    b_fused = (bn_beta - bn_mean * scale).astype(jnp.float32)       # (1,)
    return w_fused, b_fused


def _sse_pallas(x_nchw, w_fused, b_fused, gated):
    N, C, H, W = x_nchw.shape
    L = H * W
    # Free, contiguous reshape: NCHW -> (N, C, H*W). No transpose, no upcast.
    x_ncl = x_nchw.reshape(N, C, L)

    budget, vmem_limit = _vmem_config()
    tm = _pick_tm(N, C, x_ncl.dtype.itemsize, L, gated, budget)
    grid = (pl.cdiv(L, tm),)

    out_shapes = [jax.ShapeDtypeStruct((N, L), x_nchw.dtype)]
    out_specs = [pl.BlockSpec((N, tm), lambda i: (0, i))]
    if gated:
        out_shapes.append(jax.ShapeDtypeStruct((N, C, L), x_nchw.dtype))
        out_specs.append(pl.BlockSpec((N, C, tm), lambda i: (0, 0, i)))

    outs = pl.pallas_call(
        _make_sse_kernel(gated),
        out_shape=tuple(out_shapes),
        grid_spec=pltpu.PrefetchScalarGridSpec(
            num_scalar_prefetch=0,
            grid=grid,
            in_specs=[
                pl.BlockSpec(memory_space=pltpu.MemorySpace.SMEM),   # bias (1,)
                pl.BlockSpec((C, 1), lambda i: (0, 0)),              # weight
                pl.BlockSpec((N, C, tm), lambda i: (0, 0, i)),       # x tile
            ],
            out_specs=tuple(out_specs),
        ),
        compiler_params=pltpu.CompilerParams(
            dimension_semantics=("parallel",),
            vmem_limit_bytes=vmem_limit),
    )(b_fused, w_fused, x_ncl)
    return outs


def sse_forward(x_nchw, conv_w, bn_gamma, bn_beta, bn_mean, bn_var, eps=1e-5):
    """Original module semantics: returns sigmoid(BN(conv1x1(x))) of shape (N,1,H,W)."""
    N, C, H, W = x_nchw.shape
    w_fused, b_fused = _fuse_conv_bn(conv_w, bn_gamma, bn_beta, bn_mean, bn_var, eps)
    mask_flat, = _sse_pallas(x_nchw, w_fused, b_fused, gated=False)
    return mask_flat.reshape(N, 1, H, W)


def sse_forward_gated(x_nchw, conv_w, bn_gamma, bn_beta, bn_mean, bn_var, eps=1e-5):
    """Fused variant: returns (mask (N,1,H,W), x * mask (N,C,H,W)) in one HBM pass."""
    N, C, H, W = x_nchw.shape
    w_fused, b_fused = _fuse_conv_bn(conv_w, bn_gamma, bn_beta, bn_mean, bn_var, eps)
    mask_flat, gated_flat = _sse_pallas(x_nchw, w_fused, b_fused, gated=True)
    return mask_flat.reshape(N, 1, H, W), gated_flat.reshape(N, C, H, W)


if __name__ == "__main__":
    key = jax.random.PRNGKey(0)
    k_x, k_w, k_g, k_b, k_m, k_v, k_x2 = jax.random.split(key, 7)

    N, C, H, W = 2, 4, 16, 16
    x = jax.random.normal(k_x, (N, C, H, W), dtype=jnp.float32)

    # Deterministic synthetic parameters (shapes from the module __init__).
    conv_w = jax.random.normal(k_w, (1, C, 1, 1), dtype=jnp.float32) * 0.1
    bn_gamma = jnp.ones((1,), jnp.float32) + 0.1 * jax.random.normal(k_g, (1,))
    bn_beta = 0.1 * jax.random.normal(k_b, (1,))
    bn_mean = 0.1 * jax.random.normal(k_m, (1,))
    bn_var = jnp.abs(jax.random.normal(k_v, (1,))) + 0.5

    def ref_mask(xx):
        scale = bn_gamma / jnp.sqrt(bn_var + 1e-5)
        wf = conv_w.reshape(1, C) * scale[:, None]
        bf = bn_beta - bn_mean * scale
        return jax.nn.sigmoid(
            jnp.einsum("oc,nchw->nohw", wf, xx) + bf[None, :, None, None])

    # 1) Module-semantics path (mask only).
    out = jax.block_until_ready(
        sse_forward(x, conv_w, bn_gamma, bn_beta, bn_mean, bn_var))
    assert out.shape == (N, 1, H, W)
    assert jnp.allclose(out, ref_mask(x), atol=1e-5, rtol=1e-5)

    # 2) Tail-block path (L % tm != 0): L = 160, tm = 128 -> tail of 32 lanes.
    H2, W2 = 16, 10
    x2 = jax.random.normal(k_x2, (N, C, H2, W2), dtype=jnp.float32)
    out2 = jax.block_until_ready(
        sse_forward(x2, conv_w, bn_gamma, bn_beta, bn_mean, bn_var))
    assert out2.shape == (N, 1, H2, W2)
    assert jnp.allclose(out2, ref_mask(x2), atol=1e-5, rtol=1e-5)

    # 3) Fused gate variant (single pass over x): mask and x * mask.
    mask3, gated3 = sse_forward_gated(x, conv_w, bn_gamma, bn_beta, bn_mean, bn_var)
    jax.block_until_ready(gated3)
    assert mask3.shape == (N, 1, H, W) and gated3.shape == (N, C, H, W)
    assert jnp.allclose(mask3, ref_mask(x), atol=1e-5, rtol=1e-5)
    assert jnp.allclose(gated3, x * ref_mask(x), atol=1e-5, rtol=1e-5)

    print("KERNEL_OK")
</pallas_src>

<mosaic_0001>
module attributes {stable_mosaic.version = 11 : i64} {
  func.func @kernel(%arg0: i32, %arg1: memref<1xf32, #tpu.memory_space<smem>>, %arg2: memref<4x1xf32, #tpu.memory_space<vmem>>, %arg3: memref<2x4x128xf32, #tpu.memory_space<vmem>>, %arg4: memref<2x128xf32, #tpu.memory_space<vmem>>) attributes {dimension_semantics = [#tpu.dimension_semantics<parallel>], iteration_bounds = array<i64: 2>, scalar_prefetch = 0 : i64, scratch_operands = 0 : i64, tpu.core_type = #tpu.core_type<tc>, window_params = [{transform_indices = @transform_0, window_bounds = array<i64: 1>}, {pipeline_mode = #tpu.pipeline_mode<synchronous>, transform_indices = @transform_1, window_bounds = array<i64: 4, 1>}, {transform_indices = @transform_2, window_bounds = array<i64: 2, 4, 128>}, {transform_indices = @transform_3, window_bounds = array<i64: 2, 128>}]} {
    %c0 = arith.constant 0 : index
    %c0_0 = arith.constant 0 : index
    %c0_1 = arith.constant 0 : index
    %0 = vector.load %arg3[%c0, %c0_0, %c0_1] : memref<2x4x128xf32, #tpu.memory_space<vmem>>, vector<2x4x128xf32>
    %c0_2 = arith.constant 0 : index
    %c0_3 = arith.constant 0 : index
    %1 = vector.load %arg2[%c0_2, %c0_3] : memref<4x1xf32, #tpu.memory_space<vmem>>, vector<4x1xf32>
    %2 = vector.shape_cast %1 : vector<4x1xf32> to vector<1x4x1xf32>
    %3 = vector.broadcast %2 : vector<1x4x1xf32> to vector<2x4x128xf32>
    %4 = arith.mulf %0, %3 : vector<2x4x128xf32>
    %cst = arith.constant dense<0.000000e+00> : vector<2x128xf32>
    %5 = vector.multi_reduction <add>, %4, %cst [1] : vector<2x4x128xf32> to vector<2x128xf32>
    %c0_4 = arith.constant 0 : index
    %6 = memref.load %arg1[%c0_4] : memref<1xf32, #tpu.memory_space<smem>>
    %7 = vector.broadcast %6 : f32 to vector<2x128xf32>
    %8 = arith.addf %5, %7 : vector<2x128xf32>
    %9 = arith.negf %8 : vector<2x128xf32>
    %10 = math.exp %9 : vector<2x128xf32>
    %cst_5 = arith.constant 1.000000e+00 : f32
    %11 = vector.broadcast %cst_5 : f32 to vector<2x128xf32>
    %12 = arith.addf %11, %10 : vector<2x128xf32>
    %13 = arith.divf %11, %12 : vector<2x128xf32>
    %c0_6 = arith.constant 0 : index
    %c0_7 = arith.constant 0 : index
    %14 = vector.load %arg4[%c0_6, %c0_7] : memref<2x128xf32, #tpu.memory_space<vmem>>, vector<2x128xf32>
    tpu.vector_store %arg4[%c0_6, %c0_7], %13 {strides = array<i32>} : memref<2x128xf32, #tpu.memory_space<vmem>>, vector<2x128xf32>,
    return
  }
  func.func @transform_0(%arg0: i32) -> i32 {
    %c0_i32 = arith.constant 0 : i32
    %c0_i32_0 = arith.constant 0 : i32
    return %c0_i32 : i32
  }
  func.func @transform_1(%arg0: i32) -> (i32, i32) {
    %c0_i32 = arith.constant 0 : i32
    %c0_i32_0 = arith.constant 0 : i32
    %c0_i32_1 = arith.constant 0 : i32
    return %c0_i32, %c0_i32_0 : i32, i32
  }
  func.func @transform_2(%arg0: i32) -> (i32, i32, i32) {
    %c0_i32 = arith.constant 0 : i32
    %c0_i32_0 = arith.constant 0 : i32
    %c0_i32_1 = arith.constant 0 : i32
    return %c0_i32, %c0_i32_0, %arg0 : i32, i32, i32
  }
  func.func @transform_3(%arg0: i32) -> (i32, i32) {
    %c0_i32 = arith.constant 0 : i32
    %c0_i32_0 = arith.constant 0 : i32
    return %c0_i32, %arg0 : i32, i32
  }
}

</mosaic_0001>

<llo_original>
// kernel: tpu_custom_call.1
$region0: #{tpu_custom_call.1}
  #allocation0 [shape = 'u32[]', space=smem, size = 0x4, offset = 0x4, fixed_abs, tag = 'smem constant byte address 0x4 - core index']
  #allocation1 [shape = 'u32[144,128]{1,0:T(1,128)}', space=vmem, size = 0x12000, scoped, tag = 'internal scratch']
  #allocation2 [shape = 'f32[1]{0:T(128)S(6)}', space=smem, size = 0x200, scoped, tag = 'scoped memory for tpu_custom_call.1']
  %s0 = inlined_call_operand.<no memory space> [shape: f32[1], index: 0, kind: input, shape index: {}]
  %s1 = inlined_call_operand.vmem [shape: f32[4,1], index: 1, kind: input, shape index: {}]
  %s2 = inlined_call_operand.hbm [shape: f32[2,4,256], index: 2, kind: input, shape index: {}]
  %s3 = inlined_call_operand.hbm [shape: f32[2,256], index: 3, kind: output, shape index: {}]
  %s4 = sld [smem:[#allocation0]]
  $region49: #{tpu_custom_call.1} parent=0
    _
  %s6 = ssub.s32 1, %s4
  %s7 = scalar_select 0, %s6, %s4
  %8 = sst [smem:[#allocation2]] %s0
  $region1: #{tpu_custom_call.1} parent=0
    #allocation3 [shape = 'u8[8192]{0}', space=vmem, size = 0x2000, scoped, tag = 'input window, operand 2']
    #allocation4 [shape = 's32[2]{0}', space=sflag, size = 0x8, scoped, tag = 'scoped memory for tpu_custom_call.1']
    #allocation5 [shape = 's32[2]{0}', space=sflag, size = 0x8, scoped, tag = 'scoped memory for tpu_custom_call.1']
    #allocation6 [shape = 'u8[2048]{0}', space=vmem, size = 0x800, scoped, tag = 'output window, operand 0']
    %9 = vsyncpa [#allocation4], 0
    %s10 = scalar_lea.sflag [#allocation4], 1
    %11 = vsyncpa %s10, 0
    %12 = vsyncpa [#allocation5], 0
    %s13 = scalar_lea.sflag [#allocation5], 1
    %14 = vsyncpa %s13, 0
    loop: start=0, step=1, limit=4
    $region2: #{tpu_custom_call.1} parent=1 // loop_pre_header
      _
    $region3: #{tpu_custom_call.1} parent=1 // loop_header
      %s16 = sphi 0, %s20
      %p17 = scmp.ge.s32.totalorder %s16, 4
      %s24 = sphi 0, %s24
      %s26 = sphi 0, %s24
      %s27 = sphi 0, %s26
      %s41 = sphi 0, %s27
      %s45 = sphi 0, %s45
      %s47 = sphi 0, %s45
      %s48 = sphi 0, %s47
      %s62 = sphi 0, %s48
      %s68 = sphi 0, %s70
      %s71 = sphi 0, %s68
      %s72 = sphi 0, %s71
      %s88 = sphi 0, %s72
      %s94 = sphi 0, %s96
      %s97 = sphi 0, %s94
      %s98 = sphi 0, %s97
      %s114 = sphi 0, %s98
    $region4: #{tpu_custom_call.1} parent=1 // loop_header_branch
      %19 = sbr.rel (%p17) target = $region8
    $region5: #{tpu_custom_call.1} parent=1 // loop_body
      %s21 = ssub.s32 %s16, 1
      %s22 = ssub.s32 %s16, 2
      %s23 = sadd.s32 %s16, 1
      %s25 = sadd.s32 %s24, 1
      %p28 = scmp.eq.s32.totalorder %s16, 1
      %p29 = scmp.ne.s32.totalorder %s24, %s26
      %p30 = scmp.eq.s32.totalorder %s16, 0
      %p31 = por %p29, %p30
      %p32 = scmp.ne.s32.totalorder %s24, %s26
      %p33 = scmp.eq.s32.totalorder %s21, 1
      %p34 = por %p32, %p33
      %p35 = scmp.ne.s32.totalorder %s26, %s27
      %p36 = scmp.eq.s32.totalorder %s21, 0
      %p37 = por %p35, %p36
      %p38 = scmp.ne.s32.totalorder %s26, %s27
      %p39 = scmp.eq.s32.totalorder %s22, 1
      %p40 = por %p38, %p39
      %p42 = scmp.ne.s32.totalorder %s27, %s41
      %p43 = scmp.eq.s32.totalorder %s22, 0
      %p44 = por %p42, %p43
      %s46 = sadd.s32 %s45, 1
      %p49 = scmp.eq.s32.totalorder %s16, 1
      %p50 = scmp.ne.s32.totalorder %s45, %s47
      %p51 = scmp.eq.s32.totalorder %s16, 0
      %p52 = por %p50, %p51
      %p53 = scmp.ne.s32.totalorder %s45, %s47
      %p54 = scmp.eq.s32.totalorder %s21, 1
      %p55 = por %p53, %p54
      %p56 = scmp.ne.s32.totalorder %s47, %s48
      %p57 = scmp.eq.s32.totalorder %s21, 0
      %p58 = por %p56, %p57
      %p59 = scmp.ne.s32.totalorder %s47, %s48
      %p60 = scmp.eq.s32.totalorder %s22, 1
      %p61 = por %p59, %p60
      %p63 = scmp.ne.s32.totalorder %s48, %s62
      %p64 = scmp.eq.s32.totalorder %s22, 0
      %p65 = por %p63, %p64
      %s66 = ssub.s32 %s16, %s23
      %p67 = scmp.eq.s32.totalorder %s66, 0
      %s69 = sadd.s32 %s68, 1
      %s70 = scalar_select %p67, %s68, %s69
      %p73 = pneg %p67
      %p74 = scmp.eq.s32.totalorder %s16, 1
      %p75 = por %p73, %p74
      %p76 = scmp.ne.s32.totalorder %s68, %s71
      %p77 = scmp.eq.s32.totalorder %s16, 0
      %p78 = por %p76, %p77
      %p79 = scmp.ne.s32.totalorder %s68, %s71
      %p80 = scmp.eq.s32.totalorder %s21, 1
      %p81 = por %p79, %p80
      %p82 = scmp.ne.s32.totalorder %s71, %s72
      %p83 = scmp.eq.s32.totalorder %s21, 0
      %p84 = por %p82, %p83
      %p85 = scmp.ne.s32.totalorder %s71, %s72
      %p86 = scmp.eq.s32.totalorder %s22, 1
      %p87 = por %p85, %p86
      %p89 = scmp.ne.s32.totalorder %s72, %s88
      %p90 = scmp.eq.s32.totalorder %s22, 0
      %p91 = por %p89, %p90
      %s92 = ssub.s32 %s16, %s23
      %p93 = scmp.eq.s32.totalorder %s92, 0
      %s95 = sadd.s32 %s94, 1
      %s96 = scalar_select %p93, %s94, %s95
      %p99 = pneg %p93
      %p100 = scmp.eq.s32.totalorder %s16, 1
      %p101 = por %p99, %p100
      %p102 = scmp.ne.s32.totalorder %s94, %s97
      %p103 = scmp.eq.s32.totalorder %s16, 0
      %p104 = por %p102, %p103
      %p105 = scmp.ne.s32.totalorder %s94, %s97
      %p106 = scmp.eq.s32.totalorder %s21, 1
      %p107 = por %p105, %p106
      %p108 = scmp.ne.s32.totalorder %s97, %s98
      %p109 = scmp.eq.s32.totalorder %s21, 0
      %p110 = por %p108, %p109
      %p111 = scmp.ne.s32.totalorder %s97, %s98
      %p112 = scmp.eq.s32.totalorder %s22, 1
      %p113 = por %p111, %p112
      %p115 = scmp.ne.s32.totalorder %s98, %s114
      %p116 = scmp.eq.s32.totalorder %s22, 0
      %p117 = por %p115, %p116
      %p118 = scmp.le.s32.totalorder 1, %s16
      %p119 = scmp.lt.s32.totalorder %s16, 3
      %p120 = pnand %p118, %p119
      %p121 = pneg %p120
      // Predicated region
      $region9: #{tpu_custom_call.1} parent=5 // pred_check
        _
      $region10: #{tpu_custom_call.1} parent=5 // pred_check_branch
        %123 = sbr.rel (%p120) target = $region12
      $region11: #{tpu_custom_call.1} parent=5 // pred_region
        %s124 = ssub.s32 %s16, 1
        // Predicated region
        $region13: #{tpu_custom_call.1} parent=11 // pred_check
          %p125 = pneg %p37
        $region14: #{tpu_custom_call.1} parent=11 // pred_check_branch
          %127 = sbr.rel (%p125) target = $region16
        $region15: #{tpu_custom_call.1} parent=11 // pred_region
          _
        $region16: #{tpu_custom_call.1} parent=11 // pred_fallthru
          _
        // Predicated region
        $region17: #{tpu_custom_call.1} parent=11 // pred_check
          %p128 = pneg %p58
        $region18: #{tpu_custom_call.1} parent=11 // pred_check_branch
          %130 = sbr.rel (%p128) target = $region20
        $region19: #{tpu_custom_call.1} parent=11 // pred_region
          _
        $region20: #{tpu_custom_call.1} parent=11 // pred_fallthru
          _
      $region12: #{tpu_custom_call.1} parent=5 // pred_fallthru
        _
      %p131 = scmp.lt.s32.totalorder %s16, 2
      // Predicated region
      $region21: #{tpu_custom_call.1} parent=5 // pred_check
        %p132 = pneg %p131
      $region22: #{tpu_custom_call.1} parent=5 // pred_check_branch
        %134 = sbr.rel (%p132) target = $region24
      $region23: #{tpu_custom_call.1} parent=5 // pred_region
        // Predicated region
        $region25: #{tpu_custom_call.1} parent=23 // pred_check
          %p135 = pneg %p78
        $region26: #{tpu_custom_call.1} parent=23 // pred_check_branch
          %137 = sbr.rel (%p135) target = $region28
        $region27: #{tpu_custom_call.1} parent=23 // pred_region
          %s138 = sand.u32 %s68, 1
          %s139 = scalar_lea.sflag [#allocation4], %s138
          %s140 = sand.u32 %s68, 1
          %s141 = smul.addr %s140, 8
          %s142 = scalar_lea.vmem [#allocation3], %s141
          %s144 = ssub.s32 128, 128
          %145 = vsyncadd %s139, %s144
          %s146 = smul.addr %s16, 64
          %s147 = scalar_lea.hbm %s2, %s146
          %s148 = sshll.u32 %s142, 4
          %s149 = int_to_ptr.vmem [resolvable:$true] %s148
          %154 = dma.hbm_to_vmem [thread:$0]  %s147, 128, %s149, %s139, 128, 64, 4
        $region28: #{tpu_custom_call.1} parent=23 // pred_fallthru
          _
      $region24: #{tpu_custom_call.1} parent=5 // pred_fallthru
        _
      %p155 = scmp.le.s32.totalorder 1, %s16
      %p156 = scmp.lt.s32.totalorder %s16, 3
      %p157 = pnand %p155, %p156
      %p158 = pneg %p157
      // Predicated region
      $region29: #{tpu_custom_call.1} parent=5 // pred_check
        _
      $region30: #{tpu_custom_call.1} parent=5 // pred_check_branch
        %160 = sbr.rel (%p157) target = $region32
      $region31: #{tpu_custom_call.1} parent=5 // pred_region
        %s161 = ssub.s32 %s16, 1
        %s162 = sand.u32 %s71, 1
        %s163 = scalar_lea.sflag [#allocation4], %s162
        %s164 = sand.u32 %s71, 1
        %s165 = smul.addr %s164, 8
        %s166 = scalar_lea.vmem [#allocation3], %s165
        // Predicated region
        $region33: #{tpu_custom_call.1} parent=31 // pred_check
          %p167 = pneg %p84
        $region34: #{tpu_custom_call.1} parent=31 // pred_check_branch
          %169 = sbr.rel (%p167) target = $region36
        $region35: #{tpu_custom_call.1} parent=31 // pred_region
          %170 = dma.done %s163, 128
        $region36: #{tpu_custom_call.1} parent=31 // pred_fallthru
          _
        %p171 = pneg %p37
        %p172 = pneg %p34
        %p173 = pneg %p58
        %p174 = pneg %p55
        %s175 = sand.u32 %s71, 1
        %s176 = scalar_lea.sflag [#allocation4], %s175
        %s177 = sand.u32 %s71, 1
        %s178 = smul.addr %s177, 8
        %s179 = scalar_lea.vmem [#allocation3], %s178
        %p180 = pneg %p84
        %p181 = pneg %p81
        %p182 = pneg %p110
        %p183 = pneg %p107
        %s184 = sand.u32 %s97, 1
        %s185 = scalar_lea.sflag [#allocation5], %s184
        %s186 = sand.u32 %s97, 1
        %s187 = smul.addr %s186, 2
        %s188 = scalar_lea.vmem [#allocation6], %s187
        %v189 = vld [vmem:[%s166] sm:$0xf]
        %v190 = vld [vmem:[%s166 + $0x4] sm:$0xf]
        %v191 = vld [vmem:[%s1] sm:$0xf]
        %193 = vset.pattern.permute.xlu0 0
        %194 = vperm.xlu0 %193, %v191
        %v195 = vpop.permute.xlu0 %194
        %v197 = vmul.f32 %v189, %v195
        %v198 = vmul.f32 %v190, %v195
        %vm199 = vcmask 1043456
        %v200 = vsel %vm199, %v197, 0.0
        %v201 = vrot.slane %v200, 4
        %v202 = vadd.f32 %v200, %v201
        %v203 = vrot.slane %v202, 2
        %v204 = vadd.f32 %v202, %v203
        %v205 = vrot.slane %v204, 1
        %v206 = vadd.f32 %v204, %v205
        %v207 = vsel %vm199, %v198, 0.0
        %v208 = vrot.slane %v207, 4
        %v209 = vadd.f32 %v207, %v208
        %v210 = vrot.slane %v209, 2
        %v211 = vadd.f32 %v209, %v210
        %v212 = vrot.slane %v211, 1
        %v213 = vadd.f32 %v211, %v212
        %s214 = sld [smem:[#allocation2]]
        %v215 = vstv %s214
        %v216 = vadd.f32 %v206, %v215
        %v217 = vadd.f32 %v213, %v215
        %v218 = vxor.u32 %v216, 2147483648
        %v219 = vxor.u32 %v217, 2147483648
        %v220 = vmul.f32 %v218, 1.442695
        %v221 = vpow.pop %v220
        %v222 = vmul.f32 %v219, 1.442695
        %v223 = vpow.pop %v222
        %v224 = vadd.f32 %v221, 1.0
        %v225 = vadd.f32 %v223, 1.0
        %v226 = vrcp.pop %v224
        %v227 = vmul.f32 1.0, %v226
        %v228 = vrcp.pop %v225
        %v229 = vmul.f32 1.0, %v228
        %vm232 = vcmask 1041409
        %v233 = vsel %vm232, %v229, %v227
        %235 = vst [vmem:[%s188] sm:$0x3] %v233
        %s236 = sand.u32 %s97, 1
        %s237 = scalar_lea.sflag [#allocation5], %s236
        %s238 = sand.u32 %s97, 1
        %s239 = smul.addr %s238, 2
        %s240 = scalar_lea.vmem [#allocation6], %s239
        // Predicated region
        $region37: #{tpu_custom_call.1} parent=31 // pred_check
          %p241 = pneg %p107
        $region38: #{tpu_custom_call.1} parent=31 // pred_check_branch
          %243 = sbr.rel (%p241) target = $region40
        $region39: #{tpu_custom_call.1} parent=31 // pred_region
          %s245 = ssub.s32 32, 32
          %246 = vsyncadd %s237, %s245
          %s247 = smul.addr %s21, 32
          %s248 = scalar_lea.hbm %s3, %s247
          %s250 = sshll.u32 %s240, 4
          %s251 = int_to_ptr.vmem [resolvable:$true] %s250
          %253 = dma.vmem_to_hbm [thread:$0]  %s251, 32, %s248, %s237
        $region40: #{tpu_custom_call.1} parent=31 // pred_fallthru
          _
      $region32: #{tpu_custom_call.1} parent=5 // pred_fallthru
        _
      %p254 = scmp.le.s32.totalorder 2, %s16
      // Predicated region
      $region41: #{tpu_custom_call.1} parent=5 // pred_check
        %p255 = pneg %p254
      $region42: #{tpu_custom_call.1} parent=5 // pred_check_branch
        %257 = sbr.rel (%p255) target = $region44
      $region43: #{tpu_custom_call.1} parent=5 // pred_region
        %s258 = ssub.s32 %s16, 2
        // Predicated region
        $region45: #{tpu_custom_call.1} parent=43 // pred_check
          %p259 = pneg %p113
        $region46: #{tpu_custom_call.1} parent=43 // pred_check_branch
          %261 = sbr.rel (%p259) target = $region48
        $region47: #{tpu_custom_call.1} parent=43 // pred_region
          %s262 = sand.u32 %s98, 1
          %s263 = scalar_lea.sflag [#allocation5], %s262
          %s264 = sand.u32 %s98, 1
          %s265 = smul.addr %s264, 2
          %s266 = scalar_lea.vmem [#allocation6], %s265
          %267 = dma.done %s263, 32
        $region48: #{tpu_custom_call.1} parent=43 // pred_fallthru
          _
      $region44: #{tpu_custom_call.1} parent=5 // pred_fallthru
        _
    $region6: #{tpu_custom_call.1} parent=1 // loop_footer
      %s20 = sadd.s32 1, %s16
    $region7: #{tpu_custom_call.1} parent=1 // loop_footer_branch
      %15 = sbr.rel target = $region3
    $region8: #{tpu_custom_call.1} parent=1 // loop_exit
      _
    %268 = vsyncpa [#allocation4], 1
    %s269 = scalar_lea.sflag [#allocation4], 1
    %270 = vsyncpa %s269, 1
    %271 = vsyncpa [#allocation5], 1
    %s272 = scalar_lea.sflag [#allocation5], 1
    %273 = vsyncpa %s272, 1

</llo_original>
